<compile_context>
chip_gen: v5e
topology: v5e:2x2
jax: 0.10.0
libtpu: 0.0.40
codegen_flags: <defaults>
</compile_context>

<pallas_src>
import functools
import math

import jax
import jax.numpy as jnp
from jax.experimental import pallas as pl
from jax.experimental.pallas import tpu as pltpu

_HALF_LOG_2PI = 0.5 * math.log(2.0 * math.pi)


def _round_up(x: int, m: int) -> int:
    return ((x + m - 1) // m) * m


def _actor_kernel(*refs, deterministic: bool, need_log_prob: bool,
                  max_action: float, action_dim: int):
    if deterministic:
        (state_ref, w1_ref, b1_ref, w2_ref, b2_ref, w3_ref, b3_ref,
         wh_ref, bh_ref, out_ref) = refs
        noise = None
    else:
        (state_ref, noise_ref, w1_ref, b1_ref, w2_ref, b2_ref, w3_ref, b3_ref,
         wh_ref, bh_ref, out_ref) = refs
        noise = noise_ref[...]

    def dense(x, w_ref, b_ref):
        # bf16 operands on the MXU, f32 accumulation; bias add in f32.
        return jnp.dot(x.astype(jnp.bfloat16), w_ref[...],
                       preferred_element_type=jnp.float32) + b_ref[...]

    # trunk: 3 x (Linear + ReLU)
    h = jnp.maximum(dense(state_ref[...], w1_ref, b1_ref), 0.0)
    h = jnp.maximum(dense(h, w2_ref, b2_ref), 0.0)
    h = jnp.maximum(dense(h, w3_ref, b3_ref), 0.0)

    # fused mu / log_std head: one [hidden, 2*action_dim] matmul, split in-register
    head = dense(h, wh_ref, bh_ref)
    mu = head[:, :action_dim]
    log_std = jnp.clip(head[:, action_dim:], -5.0, 2.0)

    if deterministic:
        action = mu
    else:
        action = mu + jnp.exp(log_std) * noise  # rsample with host-supplied eps

    tanh_action = jnp.tanh(action)

    # lane-dense packed output slab: [action | logp | zero padding]
    out_ref[...] = jnp.zeros_like(out_ref)
    out_ref[:, :action_dim] = (tanh_action * max_action).astype(out_ref.dtype)

    if need_log_prob:
        # z = (action - mu) / std is exactly the sampling noise (or 0 if deterministic)
        if deterministic:
            zz = jnp.zeros_like(mu)
        else:
            zz = noise * noise
        lp = jnp.sum(-0.5 * zz - log_std, axis=-1, keepdims=True)
        lp = lp - float(action_dim) * _HALF_LOG_2PI      # constant folded out of the loop
        lp = lp - jnp.sum(jnp.log(1.0 - tanh_action * tanh_action + 1e-6),
                          axis=-1, keepdims=True)
        out_ref[:, action_dim:action_dim + 1] = lp.astype(out_ref.dtype)


def prepare_params(params):
    """Convert raw f32 params into kernel-ready layout: bf16 weights ([in, out]),
    f32 row biases, fused mu|log_std head."""
    w_head = jnp.concatenate([params["wmu"], params["wls"]], axis=1)
    b_head = jnp.concatenate([params["bmu"], params["bls"]], axis=0)
    bf16 = lambda x: x.astype(jnp.bfloat16)
    row = lambda x: x.reshape(1, -1).astype(jnp.float32)
    return dict(
        w1=bf16(params["w1"]), b1=row(params["b1"]),
        w2=bf16(params["w2"]), b2=row(params["b2"]),
        w3=bf16(params["w3"]), b3=row(params["b3"]),
        w_head=bf16(w_head), b_head=row(b_head),
    )


def gaussian_actor_forward(kparams, state, noise=None, *,
                           deterministic=False, need_log_prob=False,
                           max_action=1.0, block_b=256):
    """Returns (tanh_action * max_action, log_prob or None)."""
    B, state_dim = state.shape
    action_dim = kparams["w_head"].shape[1] // 2
    out_w = _round_up(action_dim + 1, 128)        # lane-dense packed output width

    # batch tile: 256 rows (safe for v7x's 64 MiB VMEM too), min-padded to 8 sublanes
    tb = min(block_b, _round_up(B, 8))
    b_pad = _round_up(B, tb)

    state = state.astype(jnp.float32)
    if b_pad != B:
        state = jnp.pad(state, ((0, b_pad - B), (0, 0)))

    inputs = [state]
    in_specs = [pl.BlockSpec((tb, state_dim), lambda i: (i, 0))]

    if not deterministic:
        if noise is None:
            raise ValueError("noise (standard normal, [B, action_dim]) is required "
                             "for stochastic sampling")
        noise = noise.astype(jnp.float32)
        if b_pad != B:
            noise = jnp.pad(noise, ((0, b_pad - B), (0, 0)))
        inputs.append(noise)
        in_specs.append(pl.BlockSpec((tb, action_dim), lambda i: (i, 0)))

    # weights & biases: full-array blocks, constant index_map -> VMEM-resident
    for name in ("w1", "b1", "w2", "b2", "w3", "b3", "w_head", "b_head"):
        arr = kparams[name]
        inputs.append(arr)
        in_specs.append(pl.BlockSpec(arr.shape, lambda i: (0, 0)))

    kernel = functools.partial(
        _actor_kernel,
        deterministic=deterministic, need_log_prob=need_log_prob,
        max_action=float(max_action), action_dim=action_dim)

    out = pl.pallas_call(
        kernel,
        out_shape=jax.ShapeDtypeStruct((b_pad, out_w), jnp.float32),
        grid=(b_pad // tb,),
        in_specs=in_specs,
        out_specs=pl.BlockSpec((tb, out_w), lambda i: (i, 0)),
        compiler_params=pltpu.CompilerParams(dimension_semantics=("parallel",)),
    )(*inputs)

    act = out[:B, :action_dim]
    log_prob = out[:B, action_dim] if need_log_prob else None
    return act, log_prob


def init_params(key, state_dim, action_dim, hidden_dim, edac_init=True):
    """Deterministic synthetic init mirroring the PyTorch module's __init__."""
    ks = jax.random.split(key, 10)

    def linear(kw, kb, fan_in, fan_out):
        bound = 1.0 / jnp.sqrt(fan_in)
        w = jax.random.uniform(kw, (fan_in, fan_out), jnp.float32, -bound, bound)
        b = jax.random.uniform(kb, (fan_out,), jnp.float32, -bound, bound)
        return w, b

    w1, b1 = linear(ks[0], ks[1], state_dim, hidden_dim)
    w2, b2 = linear(ks[2], ks[3], hidden_dim, hidden_dim)
    w3, b3 = linear(ks[4], ks[5], hidden_dim, hidden_dim)
    wmu, bmu = linear(ks[6], ks[7], hidden_dim, action_dim)
    wls, bls = linear(ks[8], ks[9], hidden_dim, action_dim)

    if edac_init:
        b1 = jnp.full_like(b1, 0.1)
        b2 = jnp.full_like(b2, 0.1)
        b3 = jnp.full_like(b3, 0.1)
        wmu = jax.random.uniform(ks[6], wmu.shape, jnp.float32, -0.001, 0.001)
        bmu = jax.random.uniform(ks[7], bmu.shape, jnp.float32, -0.001, 0.001)
        wls = jax.random.uniform(ks[8], wls.shape, jnp.float32, -0.001, 0.001)
        bls = jax.random.uniform(ks[9], bls.shape, jnp.float32, -0.001, 0.001)

    return dict(w1=w1, b1=b1, w2=w2, b2=b2, w3=w3, b3=b3,
                wmu=wmu, bmu=bmu, wls=wls, bls=bls)


def _reference_forward(params, state, noise, deterministic, need_log_prob, max_action):
    """Pure-JAX reference using the same bf16-operand / f32-accumulate matmul
    precision as the kernel, but the literal torch.distributions.Normal math."""
    def dense(x, w, b):
        return jnp.dot(x.astype(jnp.bfloat16), w.astype(jnp.bfloat16),
                       preferred_element_type=jnp.float32) + b

    h = jnp.maximum(dense(state, params["w1"], params["b1"]), 0.0)
    h = jnp.maximum(dense(h, params["w2"], params["b2"]), 0.0)
    h = jnp.maximum(dense(h, params["w3"], params["b3"]), 0.0)
    mu = dense(h, params["wmu"], params["bmu"])
    log_std = jnp.clip(dense(h, params["wls"], params["bls"]), -5.0, 2.0)
    std = jnp.exp(log_std)
    action = mu if deterministic else mu + std * noise
    tanh_action = jnp.tanh(action)
    lp = None
    if need_log_prob:
        z = (action - mu) / std
        lp = jnp.sum(-0.5 * z * z - log_std - 0.5 * jnp.log(2.0 * jnp.pi), axis=-1)
        lp = lp - jnp.sum(jnp.log(1.0 - tanh_action ** 2 + 1e-6), axis=-1)
    return tanh_action * max_action, lp


if __name__ == "__main__":
    key = jax.random.PRNGKey(0)
    k_param, k_state, k_noise, k_state2, k_noise2 = jax.random.split(key, 5)

    state_dim, action_dim, hidden_dim = 16, 8, 32
    max_action = 1.0

    params = init_params(k_param, state_dim, action_dim, hidden_dim, edac_init=True)
    kparams = prepare_params(params)

    # --- small batch: stochastic path with log-prob ------------------------------
    B = 2
    state = jax.random.normal(k_state, (B, state_dim), jnp.float32)
    noise = jax.random.normal(k_noise, (B, action_dim), jnp.float32)

    act, logp = gaussian_actor_forward(kparams, state, noise,
                                       deterministic=False, need_log_prob=True,
                                       max_action=max_action)
    act = jax.block_until_ready(act)
    logp = jax.block_until_ready(logp)
    ref_act, ref_lp = _reference_forward(params, state, noise, False, True, max_action)
    assert jnp.allclose(act, ref_act, atol=1e-5, rtol=1e-5)
    assert jnp.allclose(logp, ref_lp, atol=1e-4, rtol=1e-4)

    # --- deterministic act()-style path (no noise input, no log-prob work) -------
    act_det, lp_none = gaussian_actor_forward(kparams, state,
                                              deterministic=True, need_log_prob=False,
                                              max_action=max_action)
    act_det = jax.block_until_ready(act_det)
    ref_det, _ = _reference_forward(params, state, None, True, False, max_action)
    assert lp_none is None
    assert jnp.allclose(act_det, ref_det, atol=1e-5, rtol=1e-5)

    # --- deterministic + log-prob (z == 0 path) -----------------------------------
    act_dl, lp_dl = gaussian_actor_forward(kparams, state,
                                           deterministic=True, need_log_prob=True,
                                           max_action=max_action)
    lp_dl = jax.block_until_ready(lp_dl)
    _, ref_lp_dl = _reference_forward(params, state, None, True, True, max_action)
    assert jnp.allclose(lp_dl, ref_lp_dl, atol=1e-4, rtol=1e-4)

    # --- larger batch exercising the batch grid (B not a multiple of the tile) ---
    B2 = 300
    state2 = jax.random.normal(k_state2, (B2, state_dim), jnp.float32)
    noise2 = jax.random.normal(k_noise2, (B2, action_dim), jnp.float32)
    act2, lp2 = gaussian_actor_forward(kparams, state2, noise2,
                                       deterministic=False, need_log_prob=True,
                                       max_action=max_action)
    act2 = jax.block_until_ready(act2)
    lp2 = jax.block_until_ready(lp2)
    ref_act2, ref_lp2 = _reference_forward(params, state2, noise2, False, True, max_action)
    assert jnp.allclose(act2, ref_act2, atol=1e-5, rtol=1e-5)
    assert jnp.allclose(lp2, ref_lp2, atol=1e-4, rtol=1e-4)

    print("KERNEL_OK")
</pallas_src>

<mosaic_0001>
module attributes {stable_mosaic.version = 11 : i64} {
  func.func @_actor_kernel(%arg0: i32, %arg1: memref<8x16xf32, #tpu.memory_space<vmem>>, %arg2: memref<8x8xf32, #tpu.memory_space<vmem>>, %arg3: memref<16x32xbf16, #tpu.memory_space<vmem>>, %arg4: memref<1x32xf32, #tpu.memory_space<vmem>>, %arg5: memref<32x32xbf16, #tpu.memory_space<vmem>>, %arg6: memref<1x32xf32, #tpu.memory_space<vmem>>, %arg7: memref<32x32xbf16, #tpu.memory_space<vmem>>, %arg8: memref<1x32xf32, #tpu.memory_space<vmem>>, %arg9: memref<32x16xbf16, #tpu.memory_space<vmem>>, %arg10: memref<1x16xf32, #tpu.memory_space<vmem>>, %arg11: memref<8x128xf32, #tpu.memory_space<vmem>>) attributes {dimension_semantics = [#tpu.dimension_semantics<parallel>], iteration_bounds = array<i64: 1>, scalar_prefetch = 0 : i64, scratch_operands = 0 : i64, tpu.core_type = #tpu.core_type<tc>, window_params = [{transform_indices = @transform_0, window_bounds = array<i64: 8, 16>}, {transform_indices = @transform_1, window_bounds = array<i64: 8, 8>}, {pipeline_mode = #tpu.pipeline_mode<synchronous>, transform_indices = @transform_2, window_bounds = array<i64: 16, 32>}, {pipeline_mode = #tpu.pipeline_mode<synchronous>, transform_indices = @transform_3, window_bounds = array<i64: 1, 32>}, {pipeline_mode = #tpu.pipeline_mode<synchronous>, transform_indices = @transform_4, window_bounds = array<i64: 32, 32>}, {pipeline_mode = #tpu.pipeline_mode<synchronous>, transform_indices = @transform_5, window_bounds = array<i64: 1, 32>}, {pipeline_mode = #tpu.pipeline_mode<synchronous>, transform_indices = @transform_6, window_bounds = array<i64: 32, 32>}, {pipeline_mode = #tpu.pipeline_mode<synchronous>, transform_indices = @transform_7, window_bounds = array<i64: 1, 32>}, {pipeline_mode = #tpu.pipeline_mode<synchronous>, transform_indices = @transform_8, window_bounds = array<i64: 32, 16>}, {pipeline_mode = #tpu.pipeline_mode<synchronous>, transform_indices = @transform_9, window_bounds = array<i64: 1, 16>}, {transform_indices = @transform_10, window_bounds = array<i64: 8, 128>}]} {
    %c0 = arith.constant 0 : index
    %c0_0 = arith.constant 0 : index
    %0 = vector.load %arg2[%c0, %c0_0] : memref<8x8xf32, #tpu.memory_space<vmem>>, vector<8x8xf32>
    %c0_1 = arith.constant 0 : index
    %c0_2 = arith.constant 0 : index
    %1 = vector.load %arg1[%c0_1, %c0_2] : memref<8x16xf32, #tpu.memory_space<vmem>>, vector<8x16xf32>
    %2 = arith.truncf %1 : vector<8x16xf32> to vector<8x16xbf16>
    %c0_3 = arith.constant 0 : index
    %c0_4 = arith.constant 0 : index
    %3 = vector.load %arg3[%c0_3, %c0_4] : memref<16x32xbf16, #tpu.memory_space<vmem>>, vector<16x32xbf16>
    %cst = arith.constant dense<0.000000e+00> : vector<8x32xf32>
    %4 = tpu.matmul %2, %3, %cst {dimension_numbers = #tpu.dot_dimension_numbers<[1], [0], [0], [1], [0, 0, 1, 1], [], []>} : vector<8x16xbf16>, vector<16x32xbf16>, vector<8x32xf32> -> vector<8x32xf32>
    %c0_5 = arith.constant 0 : index
    %c0_6 = arith.constant 0 : index
    %5 = vector.load %arg4[%c0_5, %c0_6] : memref<1x32xf32, #tpu.memory_space<vmem>>, vector<1x32xf32>
    %6 = vector.broadcast %5 : vector<1x32xf32> to vector<8x32xf32>
    %7 = arith.addf %4, %6 : vector<8x32xf32>
    %cst_7 = arith.constant 0.000000e+00 : f32
    %8 = vector.broadcast %cst_7 : f32 to vector<8x32xf32>
    %9 = arith.maximumf %7, %8 : vector<8x32xf32>
    %10 = arith.truncf %9 : vector<8x32xf32> to vector<8x32xbf16>
    %c0_8 = arith.constant 0 : index
    %c0_9 = arith.constant 0 : index
    %11 = vector.load %arg5[%c0_8, %c0_9] : memref<32x32xbf16, #tpu.memory_space<vmem>>, vector<32x32xbf16>
    %cst_10 = arith.constant dense<0.000000e+00> : vector<8x32xf32>
    %12 = tpu.matmul %10, %11, %cst_10 {dimension_numbers = #tpu.dot_dimension_numbers<[1], [0], [0], [1], [0, 0, 1, 1], [], []>} : vector<8x32xbf16>, vector<32x32xbf16>, vector<8x32xf32> -> vector<8x32xf32>
    %c0_11 = arith.constant 0 : index
    %c0_12 = arith.constant 0 : index
    %13 = vector.load %arg6[%c0_11, %c0_12] : memref<1x32xf32, #tpu.memory_space<vmem>>, vector<1x32xf32>
    %14 = vector.broadcast %13 : vector<1x32xf32> to vector<8x32xf32>
    %15 = arith.addf %12, %14 : vector<8x32xf32>
    %cst_13 = arith.constant 0.000000e+00 : f32
    %16 = vector.broadcast %cst_13 : f32 to vector<8x32xf32>
    %17 = arith.maximumf %15, %16 : vector<8x32xf32>
    %18 = arith.truncf %17 : vector<8x32xf32> to vector<8x32xbf16>
    %c0_14 = arith.constant 0 : index
    %c0_15 = arith.constant 0 : index
    %19 = vector.load %arg7[%c0_14, %c0_15] : memref<32x32xbf16, #tpu.memory_space<vmem>>, vector<32x32xbf16>
    %cst_16 = arith.constant dense<0.000000e+00> : vector<8x32xf32>
    %20 = tpu.matmul %18, %19, %cst_16 {dimension_numbers = #tpu.dot_dimension_numbers<[1], [0], [0], [1], [0, 0, 1, 1], [], []>} : vector<8x32xbf16>, vector<32x32xbf16>, vector<8x32xf32> -> vector<8x32xf32>
    %c0_17 = arith.constant 0 : index
    %c0_18 = arith.constant 0 : index
    %21 = vector.load %arg8[%c0_17, %c0_18] : memref<1x32xf32, #tpu.memory_space<vmem>>, vector<1x32xf32>
    %22 = vector.broadcast %21 : vector<1x32xf32> to vector<8x32xf32>
    %23 = arith.addf %20, %22 : vector<8x32xf32>
    %cst_19 = arith.constant 0.000000e+00 : f32
    %24 = vector.broadcast %cst_19 : f32 to vector<8x32xf32>
    %25 = arith.maximumf %23, %24 : vector<8x32xf32>
    %26 = arith.truncf %25 : vector<8x32xf32> to vector<8x32xbf16>
    %c0_20 = arith.constant 0 : index
    %c0_21 = arith.constant 0 : index
    %27 = vector.load %arg9[%c0_20, %c0_21] : memref<32x16xbf16, #tpu.memory_space<vmem>>, vector<32x16xbf16>
    %cst_22 = arith.constant dense<0.000000e+00> : vector<8x16xf32>
    %28 = tpu.matmul %26, %27, %cst_22 {dimension_numbers = #tpu.dot_dimension_numbers<[1], [0], [0], [1], [0, 0, 1, 1], [], []>} : vector<8x32xbf16>, vector<32x16xbf16>, vector<8x16xf32> -> vector<8x16xf32>
    %c0_23 = arith.constant 0 : index
    %c0_24 = arith.constant 0 : index
    %29 = vector.load %arg10[%c0_23, %c0_24] : memref<1x16xf32, #tpu.memory_space<vmem>>, vector<1x16xf32>
    %30 = vector.broadcast %29 : vector<1x16xf32> to vector<8x16xf32>
    %31 = arith.addf %28, %30 : vector<8x16xf32>
    %32 = vector.extract_strided_slice %31 {offsets = [0, 0], sizes = [8, 8], strides = [1, 1]} : vector<8x16xf32> to vector<8x8xf32>
    %33 = vector.extract_strided_slice %31 {offsets = [0, 8], sizes = [8, 8], strides = [1, 1]} : vector<8x16xf32> to vector<8x8xf32>
    %cst_25 = arith.constant -5.000000e+00 : f32
    %cst_26 = arith.constant 2.000000e+00 : f32
    %34 = vector.broadcast %cst_25 : f32 to vector<8x8xf32>
    %35 = arith.maximumf %34, %33 : vector<8x8xf32>
    %36 = vector.broadcast %cst_26 : f32 to vector<8x8xf32>
    %37 = arith.minimumf %36, %35 : vector<8x8xf32>
    %38 = math.exp %37 : vector<8x8xf32>
    %39 = arith.mulf %38, %0 : vector<8x8xf32>
    %40 = arith.addf %32, %39 : vector<8x8xf32>
    %41 = math.tanh %40 : vector<8x8xf32>
    %cst_27 = arith.constant 0.000000e+00 : f32
    %42 = vector.broadcast %cst_27 : f32 to vector<8x128xf32>
    %c0_28 = arith.constant 0 : index
    %c0_29 = arith.constant 0 : index
    %43 = vector.load %arg11[%c0_28, %c0_29] : memref<8x128xf32, #tpu.memory_space<vmem>>, vector<8x128xf32>
    tpu.vector_store %arg11[%c0_28, %c0_29], %42 {strides = array<i32>} : memref<8x128xf32, #tpu.memory_space<vmem>>, vector<8x128xf32>,
    %cst_30 = arith.constant 1.000000e+00 : f32
    %44 = vector.broadcast %cst_30 : f32 to vector<8x8xf32>
    %45 = arith.mulf %41, %44 : vector<8x8xf32>
    %c0_31 = arith.constant 0 : index
    %c0_32 = arith.constant 0 : index
    %46 = vector.load %arg11[%c0_31, %c0_32] : memref<8x128xf32, #tpu.memory_space<vmem>>, vector<8x8xf32>
    tpu.vector_store %arg11[%c0_31, %c0_32], %45 {strides = array<i32>} : memref<8x128xf32, #tpu.memory_space<vmem>>, vector<8x8xf32>,
    %47 = arith.mulf %0, %0 : vector<8x8xf32>
    %cst_33 = arith.constant -5.000000e-01 : f32
    %48 = vector.broadcast %cst_33 : f32 to vector<8x8xf32>
    %49 = arith.mulf %48, %47 : vector<8x8xf32>
    %50 = arith.subf %49, %37 : vector<8x8xf32>
    %cst_34 = arith.constant dense<0.000000e+00> : vector<8xf32>
    %51 = vector.multi_reduction <add>, %50, %cst_34 [1] : vector<8x8xf32> to vector<8xf32>
    %52 = vector.shape_cast %51 : vector<8xf32> to vector<8x1xf32>
    %cst_35 = arith.constant 7.35150814 : f32
    %53 = vector.broadcast %cst_35 : f32 to vector<8x1xf32>
    %54 = arith.subf %52, %53 : vector<8x1xf32>
    %55 = arith.mulf %41, %41 : vector<8x8xf32>
    %cst_36 = arith.constant 1.000000e+00 : f32
    %56 = vector.broadcast %cst_36 : f32 to vector<8x8xf32>
    %57 = arith.subf %56, %55 : vector<8x8xf32>
    %cst_37 = arith.constant 9.99999997E-7 : f32
    %58 = vector.broadcast %cst_37 : f32 to vector<8x8xf32>
    %59 = arith.addf %57, %58 : vector<8x8xf32>
    %60 = math.log %59 : vector<8x8xf32>
    %cst_38 = arith.constant dense<0.000000e+00> : vector<8xf32>
    %61 = vector.multi_reduction <add>, %60, %cst_38 [1] : vector<8x8xf32> to vector<8xf32>
    %62 = vector.shape_cast %61 : vector<8xf32> to vector<8x1xf32>
    %63 = arith.subf %54, %62 : vector<8x1xf32>
    %c0_39 = arith.constant 0 : index
    %c8 = arith.constant 8 : index
    %64 = vector.load %arg11[%c0_39, %c8] : memref<8x128xf32, #tpu.memory_space<vmem>>, vector<8x1xf32>
    tpu.vector_store %arg11[%c0_39, %c8], %63 {strides = array<i32>} : memref<8x128xf32, #tpu.memory_space<vmem>>, vector<8x1xf32>,
    return
  }
  func.func @transform_0(%arg0: i32) -> (i32, i32) {
    %c0_i32 = arith.constant 0 : i32
    %c0_i32_0 = arith.constant 0 : i32
    return %arg0, %c0_i32 : i32, i32
  }
  func.func @transform_1(%arg0: i32) -> (i32, i32) {
    %c0_i32 = arith.constant 0 : i32
    %c0_i32_0 = arith.constant 0 : i32
    return %arg0, %c0_i32 : i32, i32
  }
  func.func @transform_2(%arg0: i32) -> (i32, i32) {
    %c0_i32 = arith.constant 0 : i32
    %c0_i32_0 = arith.constant 0 : i32
    %c0_i32_1 = arith.constant 0 : i32
    return %c0_i32, %c0_i32_0 : i32, i32
  }
  func.func @transform_3(%arg0: i32) -> (i32, i32) {
    %c0_i32 = arith.constant 0 : i32
    %c0_i32_0 = arith.constant 0 : i32
    %c0_i32_1 = arith.constant 0 : i32
    return %c0_i32, %c0_i32_0 : i32, i32
  }
  func.func @transform_4(%arg0: i32) -> (i32, i32) {
    %c0_i32 = arith.constant 0 : i32
    %c0_i32_0 = arith.constant 0 : i32
    %c0_i32_1 = arith.constant 0 : i32
    return %c0_i32, %c0_i32_0 : i32, i32
  }
  func.func @transform_5(%arg0: i32) -> (i32, i32) {
    %c0_i32 = arith.constant 0 : i32
    %c0_i32_0 = arith.constant 0 : i32
    %c0_i32_1 = arith.constant 0 : i32
    return %c0_i32, %c0_i32_0 : i32, i32
  }
  func.func @transform_6(%arg0: i32) -> (i32, i32) {
    %c0_i32 = arith.constant 0 : i32
    %c0_i32_0 = arith.constant 0 : i32
    %c0_i32_1 = arith.constant 0 : i32
    return %c0_i32, %c0_i32_0 : i32, i32
  }
  func.func @transform_7(%arg0: i32) -> (i32, i32) {
    %c0_i32 = arith.constant 0 : i32
    %c0_i32_0 = arith.constant 0 : i32
    %c0_i32_1 = arith.constant 0 : i32
    return %c0_i32, %c0_i32_0 : i32, i32
  }
  func.func @transform_8(%arg0: i32) -> (i32, i32) {
    %c0_i32 = arith.constant 0 : i32
    %c0_i32_0 = arith.constant 0 : i32
    %c0_i32_1 = arith.constant 0 : i32
    return %c0_i32, %c0_i32_0 : i32, i32
  }
  func.func @transform_9(%arg0: i32) -> (i32, i32) {
    %c0_i32 = arith.constant 0 : i32
    %c0_i32_0 = arith.constant 0 : i32
    %c0_i32_1 = arith.constant 0 : i32
    return %c0_i32, %c0_i32_0 : i32, i32
  }
  func.func @transform_10(%arg0: i32) -> (i32, i32) {
    %c0_i32 = arith.constant 0 : i32
    %c0_i32_0 = arith.constant 0 : i32
    return %arg0, %c0_i32 : i32, i32
  }
}

</mosaic_0001>

<llo_original>
// kernel: tpu_custom_call.1
$region0: #{tpu_custom_call.1}
  #allocation0 [shape = 'u32[]', space=smem, size = 0x4, offset = 0x4, fixed_abs, tag = 'smem constant byte address 0x4 - core index']
  #allocation1 [shape = 'u32[72,128]{1,0:T(1,128)}', space=vmem, size = 0x9000, scoped, tag = 'internal scratch']
  %s0 = inlined_call_operand.vmem [shape: f32[8,16], index: 0, kind: input, shape index: {}]
  %s1 = inlined_call_operand.hbm [shape: f32[8,8], index: 1, kind: input, shape index: {}]
  %s2 = inlined_call_operand.hbm [shape: bf16[16,32], index: 2, kind: input, shape index: {}]
  %s3 = inlined_call_operand.vmem [shape: f32[1,32], index: 3, kind: input, shape index: {}]
  %s4 = inlined_call_operand.vmem [shape: bf16[32,32], index: 4, kind: input, shape index: {}]
  %s5 = inlined_call_operand.vmem [shape: f32[1,32], index: 5, kind: input, shape index: {}]
  %s6 = inlined_call_operand.hbm [shape: bf16[32,32], index: 6, kind: input, shape index: {}]
  %s7 = inlined_call_operand.vmem [shape: f32[1,32], index: 7, kind: input, shape index: {}]
  %s8 = inlined_call_operand.vmem [shape: bf16[32,16], index: 8, kind: input, shape index: {}]
  %s9 = inlined_call_operand.vmem [shape: f32[1,16], index: 9, kind: input, shape index: {}]
  %s10 = inlined_call_operand.hbm [shape: f32[8,128], index: 10, kind: output, shape index: {}]
  %s11 = sld [smem:[#allocation0]]
  $region62: #{tpu_custom_call.1} parent=0
    _
  %s13 = ssub.s32 1, %s11
  %s14 = scalar_select 0, %s13, %s11
  $region1: #{tpu_custom_call.1} parent=0
    #allocation2 [shape = 'u8[4096]{0}', space=vmem, size = 0x1000, scoped, tag = 'input window, operand 1, single buffered']
    #allocation3 [shape = 's32[1]{0}', space=sflag, size = 0x4, scoped, tag = 'scoped memory for tpu_custom_call.1']
    #allocation4 [shape = 's32[1]{0}', space=sflag, size = 0x4, scoped, tag = 'scoped memory for tpu_custom_call.1']
    #allocation5 [shape = 'u8[4096]{0}', space=vmem, size = 0x1000, scoped, tag = 'input window, operand 2, single buffered']
    #allocation6 [shape = 's32[1]{0}', space=sflag, size = 0x4, scoped, tag = 'scoped memory for tpu_custom_call.1']
    #allocation7 [shape = 'u8[8192]{0}', space=vmem, size = 0x2000, scoped, tag = 'input window, operand 6, single buffered']
    #allocation8 [shape = 'u8[4096]{0}', space=vmem, size = 0x1000, scoped, tag = 'output window, operand 0, single buffered']
    %15 = vsyncpa [#allocation3], 0
    %16 = vsyncpa [#allocation6], 0
    %17 = vsyncpa [#allocation4], 0
    // Predicated region
    $region2: #{tpu_custom_call.1} parent=1 // pred_check
      _
    $region3: #{tpu_custom_call.1} parent=1 // pred_check_branch
      %19 = sbr.rel (0) target = $region5
    $region4: #{tpu_custom_call.1} parent=1 // pred_region
      _
    $region5: #{tpu_custom_call.1} parent=1 // pred_fallthru
      _
    // Predicated region
    $region6: #{tpu_custom_call.1} parent=1 // pred_check
      _
    $region7: #{tpu_custom_call.1} parent=1 // pred_check_branch
      %21 = sbr.rel (0) target = $region9
    $region8: #{tpu_custom_call.1} parent=1 // pred_region
      %23 = vsyncadd [#allocation3], 0
      %s25 = sshll.u32 %s1, 4
      %s26 = int_to_ptr.hbm [resolvable:$true] %s25
      %s27 = sshll.u32 [#allocation2], 4
      %s28 = int_to_ptr.vmem [resolvable:$true] %s27
      %30 = dma.hbm_to_vmem [thread:$0]  %s26, 128, %s28, [#allocation3]
    $region9: #{tpu_custom_call.1} parent=1 // pred_fallthru
      _
    // Predicated region
    $region10: #{tpu_custom_call.1} parent=1 // pred_check
      _
    $region11: #{tpu_custom_call.1} parent=1 // pred_check_branch
      %32 = sbr.rel (0) target = $region13
    $region12: #{tpu_custom_call.1} parent=1 // pred_region
      %34 = vsyncadd [#allocation6], 0
      %s35 = sshll.u32 %s2, 4
      %s36 = int_to_ptr.hbm [resolvable:$true] %s35
      %s37 = sshll.u32 [#allocation5], 4
      %s38 = int_to_ptr.vmem [resolvable:$true] %s37
      %43 = dma.hbm_to_vmem [thread:$0]  %s36, 128, %s38, [#allocation6], 64, 64, 4
    $region13: #{tpu_custom_call.1} parent=1 // pred_fallthru
      _
    // Predicated region
    $region14: #{tpu_custom_call.1} parent=1 // pred_check
      _
    $region15: #{tpu_custom_call.1} parent=1 // pred_check_branch
      %45 = sbr.rel (0) target = $region17
    $region16: #{tpu_custom_call.1} parent=1 // pred_region
      _
    $region17: #{tpu_custom_call.1} parent=1 // pred_fallthru
      _
    // Predicated region
    $region18: #{tpu_custom_call.1} parent=1 // pred_check
      _
    $region19: #{tpu_custom_call.1} parent=1 // pred_check_branch
      %47 = sbr.rel (0) target = $region21
    $region20: #{tpu_custom_call.1} parent=1 // pred_region
      _
    $region21: #{tpu_custom_call.1} parent=1 // pred_fallthru
      _
    // Predicated region
    $region22: #{tpu_custom_call.1} parent=1 // pred_check
      _
    $region23: #{tpu_custom_call.1} parent=1 // pred_check_branch
      %49 = sbr.rel (0) target = $region25
    $region24: #{tpu_custom_call.1} parent=1 // pred_region
      _
    $region25: #{tpu_custom_call.1} parent=1 // pred_fallthru
      _
    // Predicated region
    $region26: #{tpu_custom_call.1} parent=1 // pred_check
      _
    $region27: #{tpu_custom_call.1} parent=1 // pred_check_branch
      %51 = sbr.rel (0) target = $region29
    $region28: #{tpu_custom_call.1} parent=1 // pred_region
      %53 = vsyncadd [#allocation6], 0
      %s54 = sshll.u32 %s6, 4
      %s55 = int_to_ptr.hbm [resolvable:$true] %s54
      %s56 = sshll.u32 [#allocation7], 4
      %s57 = int_to_ptr.vmem [resolvable:$true] %s56
      %62 = dma.hbm_to_vmem [thread:$0]  %s55, 256, %s57, [#allocation6], 64, 64, 4
    $region29: #{tpu_custom_call.1} parent=1 // pred_fallthru
      _
    // Predicated region
    $region30: #{tpu_custom_call.1} parent=1 // pred_check
      _
    $region31: #{tpu_custom_call.1} parent=1 // pred_check_branch
      %64 = sbr.rel (0) target = $region33
    $region32: #{tpu_custom_call.1} parent=1 // pred_region
      _
    $region33: #{tpu_custom_call.1} parent=1 // pred_fallthru
      _
    // Predicated region
    $region34: #{tpu_custom_call.1} parent=1 // pred_check
      _
    $region35: #{tpu_custom_call.1} parent=1 // pred_check_branch
      %66 = sbr.rel (0) target = $region37
    $region36: #{tpu_custom_call.1} parent=1 // pred_region
      _
    $region37: #{tpu_custom_call.1} parent=1 // pred_fallthru
      _
    // Predicated region
    $region38: #{tpu_custom_call.1} parent=1 // pred_check
      _
    $region39: #{tpu_custom_call.1} parent=1 // pred_check_branch
      %68 = sbr.rel (0) target = $region41
    $region40: #{tpu_custom_call.1} parent=1 // pred_region
      _
    $region41: #{tpu_custom_call.1} parent=1 // pred_fallthru
      _
    // Predicated region
    $region42: #{tpu_custom_call.1} parent=1 // pred_check
      _
    $region43: #{tpu_custom_call.1} parent=1 // pred_check_branch
      %70 = sbr.rel (0) target = $region45
    $region44: #{tpu_custom_call.1} parent=1 // pred_region
      %72 = dma.done [#allocation3], 128
    $region45: #{tpu_custom_call.1} parent=1 // pred_fallthru
      _
    // Predicated region
    $region46: #{tpu_custom_call.1} parent=1 // pred_check
      _
    $region47: #{tpu_custom_call.1} parent=1 // pred_check_branch
      %74 = sbr.rel (0) target = $region49
    $region48: #{tpu_custom_call.1} parent=1 // pred_region
      %76 = dma.done [#allocation6], 128
    $region49: #{tpu_custom_call.1} parent=1 // pred_fallthru
      _
    // Predicated region
    $region50: #{tpu_custom_call.1} parent=1 // pred_check
      _
    $region51: #{tpu_custom_call.1} parent=1 // pred_check_branch
      %78 = sbr.rel (0) target = $region53
    $region52: #{tpu_custom_call.1} parent=1 // pred_region
      %80 = dma.done [#allocation6], 256
    $region53: #{tpu_custom_call.1} parent=1 // pred_fallthru
      _
    %v82 = vld [vmem:[#allocation2] sm:$0xff]
    %v83 = vld [vmem:[%s0] sm:$0xff]
    %v84 = vpack.c.bf16 %v83, %v83
    %v85 = vld [vmem:[#allocation5] sm:$0xf]
    %v86 = vld [vmem:[#allocation5 + $0x4] sm:$0xf]
    %v87 = vld [vmem:[%s3] sm:$0x1]
    %v89 = vperm.slane %v87, 0
    %v93 = vunpack.c.l.b16 %v85
    %v94 = vunpack.c.l.b16 %v86
    %v95 = vpack.c.b16 %v94, %v93
    %vm97 = vcmask 130048
    %v99 = vsel %vm97, %v84, 0
    %101 = vmatpush.bf16.msra.mxu0 0
    %102 = vmatpush.bf16.msra.mxu0 0
    %103 = vmatpush.bf16.msra.mxu0 0
    %104 = vmatpush.bf16.msra.mxu0 0
    %105 = vmatpush.bf16.msra.mxu0 0
    %106 = vmatpush.bf16.msra.mxu0 0
    %107 = vmatpush.bf16.msra.mxu0 0
    %108 = vmatpush.bf16.msra.mxu0 %v95
    %109 = vmatmul.bf16.gmra.mxu0 %v99
    %v110 = vpop.f32.mrf.mxu0
    %v111 = vadd.f32 %v89, %v110
    %v112 = vpop.f32.mrf.mxu0
    %113 = vdwg.mxu0
    %v114 = vmax.f32 %v111, 0.0
    %v115 = vpack.c.bf16 %v114, %v114
    %v116 = vld [vmem:[%s4] sm:$0xf]
    %v117 = vld [vmem:[%s4 + $0x4] sm:$0xf]
    %v118 = vld [vmem:[%s4 + $0x8] sm:$0xf]
    %v119 = vld [vmem:[%s4 + $0xc] sm:$0xf]
    %v120 = vld [vmem:[%s5] sm:$0x1]
    %v122 = vperm.slane %v120, 0
    %v128 = vunpack.c.l.b16 %v116
    %v129 = vunpack.c.l.b16 %v117
    %v130 = vunpack.c.l.b16 %v118
    %v131 = vunpack.c.l.b16 %v119
    %v132 = vpack.c.b16 %v129, %v128
    %v133 = vpack.c.b16 %v131, %v130
    %vm136 = vcmask 261120
    %v138 = vsel %vm136, %v115, 0
    %140 = vmatpush.bf16.msra.mxu0 0
    %141 = vmatpush.bf16.msra.mxu0 0
    %142 = vmatpush.bf16.msra.mxu0 0
    %143 = vmatpush.bf16.msra.mxu0 0
    %144 = vmatpush.bf16.msra.mxu0 0
    %145 = vmatpush.bf16.msra.mxu0 0
    %146 = vmatpush.bf16.msra.mxu0 %v133
    %147 = vmatpush.bf16.msra.mxu0 %v132
    %148 = vmatmul.bf16.gmra.mxu0 %v138
    %v149 = vpop.f32.mrf.mxu0
    %v150 = vadd.f32 %v122, %v149
    %v151 = vpop.f32.mrf.mxu0
    %152 = vdwg.mxu0
    %v153 = vmax.f32 %v150, 0.0
    %v154 = vpack.c.bf16 %v153, %v153
    %v155 = vld [vmem:[#allocation7] sm:$0xf]
    %v156 = vld [vmem:[#allocation7 + $0x4] sm:$0xf]
    %v157 = vld [vmem:[#allocation7 + $0x8] sm:$0xf]
    %v158 = vld [vmem:[#allocation7 + $0xc] sm:$0xf]
    %v159 = vld [vmem:[%s7] sm:$0x1]
    %v161 = vperm.slane %v159, 0
    %v167 = vunpack.c.l.b16 %v155
    %v168 = vunpack.c.l.b16 %v156
    %v169 = vunpack.c.l.b16 %v157
    %v170 = vunpack.c.l.b16 %v158
    %v171 = vpack.c.b16 %v168, %v167
    %v172 = vpack.c.b16 %v170, %v169
    %v176 = vsel %vm136, %v154, 0
    %178 = vmatpush.bf16.msra.mxu0 0
    %179 = vmatpush.bf16.msra.mxu0 0
    %180 = vmatpush.bf16.msra.mxu0 0
    %181 = vmatpush.bf16.msra.mxu0 0
    %182 = vmatpush.bf16.msra.mxu0 0
    %183 = vmatpush.bf16.msra.mxu0 0
    %184 = vmatpush.bf16.msra.mxu0 %v172
    %185 = vmatpush.bf16.msra.mxu0 %v171
    %186 = vmatmul.bf16.gmra.mxu0 %v176
    %v187 = vpop.f32.mrf.mxu0
    %v188 = vadd.f32 %v161, %v187
    %v189 = vpop.f32.mrf.mxu0
    %190 = vdwg.mxu0
    %v191 = vmax.f32 %v188, 0.0
    %v192 = vpack.c.bf16 %v191, %v191
    %v193 = vld [vmem:[%s8] sm:$0xf]
    %v194 = vld [vmem:[%s8 + $0x4] sm:$0xf]
    %v195 = vld [vmem:[%s8 + $0x8] sm:$0xf]
    %v196 = vld [vmem:[%s8 + $0xc] sm:$0xf]
    %v197 = vld [vmem:[%s9] sm:$0x1]
    %v199 = vperm.slane %v197, 0
    %v205 = vunpack.c.l.b16 %v193
    %v206 = vunpack.c.l.b16 %v194
    %v207 = vunpack.c.l.b16 %v195
    %v208 = vunpack.c.l.b16 %v196
    %v209 = vpack.c.b16 %v206, %v205
    %v210 = vpack.c.b16 %v208, %v207
    %v214 = vsel %vm136, %v192, 0
    %216 = vmatpush.bf16.msra.mxu0 0
    %217 = vmatpush.bf16.msra.mxu0 0
    %218 = vmatpush.bf16.msra.mxu0 0
    %219 = vmatpush.bf16.msra.mxu0 0
    %220 = vmatpush.bf16.msra.mxu0 0
    %221 = vmatpush.bf16.msra.mxu0 0
    %222 = vmatpush.bf16.msra.mxu0 %v210
    %223 = vmatpush.bf16.msra.mxu0 %v209
    %224 = vmatmul.bf16.gmra.mxu0 %v214
    %v225 = vpop.f32.mrf.mxu0
    %v226 = vadd.f32 %v199, %v225
    %v227 = vpop.f32.mrf.mxu0
    %228 = vdwg.mxu0
    %v229 = vmax.f32 %v226, -5.0
    %v230 = vmin.f32 %v229, 2.0
    %v231 = vmul.f32 %v230, 1.442695
    %v232 = vpow.pop %v231
    %234 = vrot.lane.b32.xlu0 %v82, 8
    %v235 = vpop.permute.xlu0 %234
    %v237 = vmul.f32 %v232, %v235
    %239 = vrot.lane.b32.xlu0 %v237, 120
    %v240 = vpop.permute.xlu0 %239
    %v242 = vadd.f32 %v226, %v240
    %v243 = vtanh.pop %v242
    %244 = vst [vmem:[#allocation8] sm:$0xff] 0.0
    %vm245 = vcmask 64512
    %246 = vst.msk [vmem:[#allocation8] sm:$0xff] %vm245, %v243
    %v247 = vmul.f32 %v82, %v82
    %v248 = vmul.f32 %v247, -0.5
    %250 = vrot.lane.b32.xlu0 %v230, 120
    %v251 = vpop.permute.xlu0 %250
    %v253 = vsub.f32 %v248, %v251
    %v254 = vsel %vm245, %v253, 0.0
    %255 = vadd.xlane.f32.xlu0 %v254
    %v256 = vpop.xlane.xlu0 %255
    %v257 = vsub.f32 %v256, 7.351508
    %v258 = vmul.f32 %v243, %v243
    %v259 = vsub.f32 1.0, %v258
    %v260 = vadd.f32 %v259, 1e-06
    %v261 = vlog2.pop %v260
    %v262 = vmul.f32 %v261, 0.6931472
    %v263 = vsel %vm245, %v262, 0.0
    %264 = vadd.xlane.f32.xlu0 %v263
    %v265 = vpop.xlane.xlu0 %264
    %v266 = vsub.f32 %v257, %v265
    %vm267 = vcmask 72768
    %268 = vst.msk [vmem:[#allocation8] sm:$0xff] %vm267, %v266
    // Predicated region
    $region54: #{tpu_custom_call.1} parent=1 // pred_check
      _
    $region55: #{tpu_custom_call.1} parent=1 // pred_check_branch
      %270 = sbr.rel (0) target = $region57
    $region56: #{tpu_custom_call.1} parent=1 // pred_region
      %272 = vsyncadd [#allocation4], 0
      %s274 = sshll.u32 [#allocation8], 4
      %s275 = int_to_ptr.vmem [resolvable:$true] %s274
      %s276 = sshll.u32 %s10, 4
      %s277 = int_to_ptr.hbm [resolvable:$true] %s276
      %279 = dma.vmem_to_hbm [thread:$0]  %s275, 128, %s277, [#allocation4]
    $region57: #{tpu_custom_call.1} parent=1 // pred_fallthru
      _
    // Predicated region
    $region58: #{tpu_custom_call.1} parent=1 // pred_check
      _
    $region59: #{tpu_custom_call.1} parent=1 // pred_check_branch
      %281 = sbr.rel (0) target = $region61
    $region60: #{tpu_custom_call.1} parent=1 // pred_region
      %283 = dma.done [#allocation4], 128
    $region61: #{tpu_custom_call.1} parent=1 // pred_fallthru
      _
    %284 = vsyncpa [#allocation3], 1
    %285 = vsyncpa [#allocation6], 1
    %286 = vsyncpa [#allocation4], 1

</llo_original>
